<compile_context>
chip_gen: v5e
topology: v5e:2x2
jax: 0.10.0
libtpu: 0.0.40
codegen_flags: <defaults>
</compile_context>

<pallas_src>
import functools

import jax
import jax.numpy as jnp
from jax import lax
from jax.experimental import pallas as pl
from jax.experimental.pallas import tpu as pltpu

LN_EPS = 1e-5  # PyTorch nn.LayerNorm default


def _round_up(x, m):
    return ((x + m - 1) // m) * m


def _layer_norm(x, gamma, beta):
    mu = jnp.mean(x, axis=-1, keepdims=True)
    var = jnp.mean((x - mu) ** 2, axis=-1, keepdims=True)
    return (x - mu) * lax.rsqrt(var + LN_EPS) * gamma + beta


def _vmem_spec():
    # Whole array resident in VMEM; grid-invariant weights are not part of the
    # double-buffered block pipeline (single copy).
    return pl.BlockSpec(memory_space=pltpu.MemorySpace.VMEM)


def _nbytes(a):
    return int(a.size) * jnp.dtype(a.dtype).itemsize


def _vmem_capacity_bytes():
    try:
        return int(pltpu.get_tpu_info().vmem_capacity_bytes)  # 128 MiB v5e/v6e, 64 MiB v7x
    except Exception:
        return 128 << 20


def _default_block_n():
    # 256 matches the 256x256 MXU on v6e/v7x; 128 on v5e's 128-wide MXU.
    try:
        info = pltpu.get_tpu_info()
        ver = getattr(info, "chip_version", None)
        if ver is not None and "5" in str(getattr(ver, "name", ver)):
            return 128
    except Exception:
        pass
    return 256


def _vmem_limit_bytes(resident_arrays, per_step_block_bytes, intermediate_bytes):
    """resident weights + double-buffered blocked operands + in-kernel f32
    intermediates + fixed headroom, capped at 75% of physical VMEM."""
    cap = _vmem_capacity_bytes()
    resident = sum(_nbytes(a) for a in resident_arrays)
    est = resident + 2 * int(per_step_block_bytes) + int(intermediate_bytes) + (8 << 20)
    return int(min(max(est, 16 << 20), (3 * cap) // 4))


# ---------------- kernel 1: LayerNorm1 + fused QKV projection ----------------
def _qkv_kernel(x_ref, g1_ref, b1_ref, wqkv_ref, q_ref, k_ref, v_ref, *, scale, dim):
    x = x_ref[0].astype(jnp.float32)                        # (Tn, C)
    xn = _layer_norm(x, g1_ref[...], b1_ref[...])           # f32 statistics
    xn_b = xn.astype(jnp.bfloat16)                          # bf16 into the MXU
    # One weight-stationary MXU pass over the fused (C, 3C) weight.
    qkv = jnp.dot(xn_b, wqkv_ref[...], preferred_element_type=jnp.float32)  # (Tn, 3C)
    q_ref[0] = (qkv[:, :dim] * scale).astype(q_ref.dtype)   # fold softmax scale into q
    k_ref[0] = qkv[:, dim:2 * dim].astype(k_ref.dtype)
    v_ref[0] = qkv[:, 2 * dim:].astype(v_ref.dtype)


# ------ kernel 2: attention + proj + residual + LN2 + MLP + residual ---------
def _attn_mlp_kernel(x_ref, q_ref, k_ref, v_ref,
                     wp_ref, bp_ref, g2_ref, b2_ref,
                     w1_ref, bb1_ref, w2_ref, bb2_ref,
                     o_ref, *, num_heads, head_dim, n_valid):
    f32, bf16 = jnp.float32, jnp.bfloat16
    x = x_ref[0].astype(f32)                                # (Tn, C) residual
    q = q_ref[0]                                            # (Tn, C) bf16, pre-scaled
    k = k_ref[0]                                            # (Np, C) bf16
    v = v_ref[0]                                            # (Np, C) bf16
    n_keys = k.shape[0]

    # Padded-key additive bias built once at (1, Np); broadcast per head.
    if n_keys != n_valid:
        kidx = lax.broadcasted_iota(jnp.int32, (1, n_keys), 1)
        bias = jnp.where(kidx < n_valid, jnp.float32(0.0), jnp.float32(-1e30))
    else:
        bias = None

    # Per-head attention on lane slices of the flat q/k/v; heads are merged
    # back into a (Tn, C) context so the output projection is one matmul with
    # a full-C contraction (no H x Tn x C f32 intermediate, no sum over heads).
    ctx_parts = []
    for h in range(num_heads):
        lo = h * head_dim
        hi = lo + head_dim
        qh = q[:, lo:hi]                                    # (Tn, hd)
        kh = k[:, lo:hi]                                    # (Np, hd)
        vh = v[:, lo:hi]                                    # (Np, hd)
        s = lax.dot_general(qh, kh, (((1,), (1,)), ((), ())),
                            preferred_element_type=f32)     # (Tn, Np)
        if bias is not None:
            s = s + bias
        m = jnp.max(s, axis=-1, keepdims=True)
        p = jnp.exp(s - m)
        denom = jnp.sum(p, axis=-1, keepdims=True)
        p = p * pl.reciprocal(denom, approx=True)           # EUP divide
        ctx_parts.append(
            jnp.dot(p.astype(bf16), vh, preferred_element_type=f32).astype(bf16))
    ctx = jnp.concatenate(ctx_parts, axis=-1)               # (Tn, C) bf16

    # Single output projection: contraction dim = C (full MXU utilization).
    attn_out = jnp.dot(ctx, wp_ref[...], preferred_element_type=f32) + bp_ref[...]
    x = x + attn_out

    # MLP branch
    xn2 = _layer_norm(x, g2_ref[...], b2_ref[...])
    h1 = jnp.dot(xn2.astype(bf16), w1_ref[...],
                 preferred_element_type=f32) + bb1_ref[...]
    h1 = jax.nn.gelu(h1, approximate=False)                 # exact GELU (PyTorch default)
    h2 = jnp.dot(h1.astype(bf16), w2_ref[...],
                 preferred_element_type=f32) + bb2_ref[...]
    o_ref[0] = (x + h2).astype(o_ref.dtype)


# --------------------------------- wrapper -----------------------------------
def vit_block(x, params, num_heads, *, block_n=None):
    B, N, C = x.shape
    assert C % num_heads == 0
    hd = C // num_heads
    bf16 = jnp.bfloat16
    Ch = w_hidden = params["w1"].shape[1]

    if block_n is None:
        block_n = _default_block_n()

    # token tiling: pad N so every tile is full; padded keys get masked
    tile_n = min(_round_up(block_n, 8), _round_up(N, 8))
    n_pad = _round_up(N, tile_n)
    num_tiles = n_pad // tile_n
    x_p = jnp.pad(x, ((0, 0), (0, n_pad - N), (0, 0))) if n_pad != N else x

    # weights in bf16 for the MXU; w_qkv kept fused, w_proj kept (C, C)
    wqkv = params["w_qkv"].astype(bf16)                     # (C, 3C)
    wp = params["w_proj"].astype(bf16)                      # (C, C)
    w1 = params["w1"].astype(bf16)                          # (C, Ch)
    w2 = params["w2"].astype(bf16)                          # (Ch, C)
    g1, b1 = params["g1"], params["b1"]
    g2, b2 = params["g2"], params["b2"]
    bp, bb1, bb2 = params["b_proj"], params["bb1"], params["bb2"]

    # ---- call 1: LN1 + fused qkv projection, tiled over (batch, token tiles) ----
    per_step1 = tile_n * C * 4 + 3 * tile_n * C * 2          # x in (f32) + q/k/v out (bf16)
    interm1 = 4 * tile_n * 3 * C * 4                         # xn / qkv f32 slop
    qkv_sds = jax.ShapeDtypeStruct((B, n_pad, C), bf16)
    q_f, k_f, v_f = pl.pallas_call(
        functools.partial(_qkv_kernel, scale=hd ** (-0.5), dim=C),
        out_shape=(qkv_sds, qkv_sds, qkv_sds),
        grid_spec=pltpu.PrefetchScalarGridSpec(
            num_scalar_prefetch=0,
            grid=(B, num_tiles),
            in_specs=[
                pl.BlockSpec((1, tile_n, C), lambda b, i: (b, i, 0)),   # x
                _vmem_spec(), _vmem_spec(),                             # g1, b1
                _vmem_spec(),                                           # wqkv (fused)
            ],
            out_specs=[pl.BlockSpec((1, tile_n, C), lambda b, i: (b, i, 0))] * 3,
        ),
        compiler_params=pltpu.CompilerParams(
            dimension_semantics=("parallel", "parallel"),
            vmem_limit_bytes=_vmem_limit_bytes([wqkv, g1, b1], per_step1, interm1),
        ),
    )(x_p, g1, b1, wqkv)

    # q_f / k_f / v_f stay in flat (B, n_pad, C) layout: NO XLA reshape or
    # transpose between the two pallas_calls (heads are sliced in-kernel).

    # ---- call 2: attention + proj + residual + LN2 + MLP + residual ----
    per_step2 = (tile_n * C * 4            # x tile (f32)
                 + tile_n * C * 2          # q tile (bf16)
                 + 2 * n_pad * C * 2       # k, v full tokens (bf16)
                 + tile_n * C * 4)         # out tile (f32)
    interm2 = (4 * tile_n * n_pad * 4      # scores / probs (f32)
               + 4 * tile_n * C * 4        # ctx / residual / attn_out
               + 3 * tile_n * Ch * 4)      # MLP hidden
    out_p = pl.pallas_call(
        functools.partial(_attn_mlp_kernel,
                          num_heads=num_heads, head_dim=hd, n_valid=N),
        out_shape=jax.ShapeDtypeStruct((B, n_pad, C), x.dtype),
        grid_spec=pltpu.PrefetchScalarGridSpec(
            num_scalar_prefetch=0,
            grid=(B, num_tiles),
            in_specs=[
                pl.BlockSpec((1, tile_n, C), lambda b, i: (b, i, 0)),   # x tile
                pl.BlockSpec((1, tile_n, C), lambda b, i: (b, i, 0)),   # q tile
                pl.BlockSpec((1, n_pad, C), lambda b, i: (b, 0, 0)),    # k full (revisited)
                pl.BlockSpec((1, n_pad, C), lambda b, i: (b, 0, 0)),    # v full (revisited)
                _vmem_spec(), _vmem_spec(),   # wp, b_proj
                _vmem_spec(), _vmem_spec(),   # g2, b2
                _vmem_spec(), _vmem_spec(),   # w1, bb1
                _vmem_spec(), _vmem_spec(),   # w2, bb2
            ],
            out_specs=pl.BlockSpec((1, tile_n, C), lambda b, i: (b, i, 0)),
        ),
        compiler_params=pltpu.CompilerParams(
            dimension_semantics=("parallel", "parallel"),
            vmem_limit_bytes=_vmem_limit_bytes(
                [wp, bp, g2, b2, w1, bb1, w2, bb2], per_step2, interm2),
        ),
    )(x_p, q_f, k_f, v_f, wp, bp, g2, b2, w1, bb1, w2, bb2)

    return out_p[:, :N, :] if n_pad != N else out_p


# ------------------------------ plain-JAX reference --------------------------
def vit_block_ref(x, params, num_heads):
    """f32 reference mirroring the PyTorch forward."""
    B, N, C = x.shape
    hd = C // num_heads
    scale = hd ** (-0.5)

    def ln(v, g, b):
        return _layer_norm(v, g[0], b[0])

    xn = ln(x, params["g1"], params["b1"])
    qkv = xn @ params["w_qkv"]                               # (B, N, 3C)
    qkv = qkv.reshape(B, N, 3, num_heads, hd).transpose(2, 0, 3, 1, 4)
    q, k, v = qkv[0], qkv[1], qkv[2]                         # (B, H, N, hd)
    attn = jnp.einsum("bhnd,bhmd->bhnm", q, k) * scale
    attn = jax.nn.softmax(attn, axis=-1)
    out = jnp.einsum("bhnm,bhmd->bhnd", attn, v)
    out = out.transpose(0, 2, 1, 3).reshape(B, N, C)
    out = out @ params["w_proj"] + params["b_proj"][0]
    x = x + out

    xn2 = ln(x, params["g2"], params["b2"])
    h1 = jax.nn.gelu(xn2 @ params["w1"] + params["bb1"][0], approximate=False)
    h2 = h1 @ params["w2"] + params["bb2"][0]
    return x + h2


def init_params(key, dim, num_heads, mlp_ratio=4.0):
    H = int(dim * mlp_ratio)
    ks = jax.random.split(key, 8)
    return {
        "g1": jnp.ones((1, dim), jnp.float32),
        "b1": jnp.zeros((1, dim), jnp.float32),
        "w_qkv": 0.02 * jax.random.normal(ks[0], (dim, 3 * dim), jnp.float32),
        "w_proj": 0.02 * jax.random.normal(ks[1], (dim, dim), jnp.float32),
        "b_proj": 0.02 * jax.random.normal(ks[2], (1, dim), jnp.float32),
        "g2": jnp.ones((1, dim), jnp.float32),
        "b2": jnp.zeros((1, dim), jnp.float32),
        "w1": 0.02 * jax.random.normal(ks[3], (dim, H), jnp.float32),
        "bb1": 0.02 * jax.random.normal(ks[4], (1, H), jnp.float32),
        "w2": 0.02 * jax.random.normal(ks[5], (H, dim), jnp.float32),
        "bb2": 0.02 * jax.random.normal(ks[6], (1, dim), jnp.float32),
    }


if __name__ == "__main__":
    B, N, C = 2, 14, 64          # N deliberately NOT a multiple of the tile (tests masking)
    num_heads = 4

    key = jax.random.PRNGKey(0)
    kx, kp = jax.random.split(key)
    x = jax.random.normal(kx, (B, N, C), jnp.float32)
    params = init_params(kp, C, num_heads)

    # block_n=8 -> 2 token tiles per batch element at this toy size, exercising
    # both the token-tiled grid and the padded-key mask path.
    out = vit_block(x, params, num_heads, block_n=8)
    out = jax.block_until_ready(out)

    ref = vit_block_ref(x, params, num_heads)
    assert out.shape == (B, N, C)
    max_err = float(jnp.max(jnp.abs(out - ref)))
    # bf16 MXU inputs with f32 accumulation -> looser tolerance than pure f32
    assert jnp.allclose(out, ref, rtol=2e-2, atol=2e-2), (
        f"mismatch vs reference, max abs err {max_err}")
    print("KERNEL_OK")
</pallas_src>

<mosaic_0001>
module attributes {stable_mosaic.version = 11 : i64} {
  func.func @_qkv_kernel(%arg0: i32, %arg1: i32, %arg2: memref<1x8x64xf32, #tpu.memory_space<vmem>>, %arg3: memref<1x64xf32, #tpu.memory_space<vmem>>, %arg4: memref<1x64xf32, #tpu.memory_space<vmem>>, %arg5: memref<64x192xbf16, #tpu.memory_space<vmem>>, %arg6: memref<1x8x64xbf16, #tpu.memory_space<vmem>>, %arg7: memref<1x8x64xbf16, #tpu.memory_space<vmem>>, %arg8: memref<1x8x64xbf16, #tpu.memory_space<vmem>>) attributes {dimension_semantics = [#tpu.dimension_semantics<parallel>, #tpu.dimension_semantics<parallel>], iteration_bounds = array<i64: 2, 2>, scalar_prefetch = 0 : i64, scratch_operands = 0 : i64, tpu.core_type = #tpu.core_type<tc>, window_params = [{transform_indices = @transform_0, window_bounds = array<i64: 1, 8, 64>}, {pipeline_mode = #tpu.pipeline_mode<synchronous>, transform_indices = @transform_1, window_bounds = array<i64: 1, 64>}, {pipeline_mode = #tpu.pipeline_mode<synchronous>, transform_indices = @transform_2, window_bounds = array<i64: 1, 64>}, {pipeline_mode = #tpu.pipeline_mode<synchronous>, transform_indices = @transform_3, window_bounds = array<i64: 64, 192>}, {transform_indices = @transform_4, window_bounds = array<i64: 1, 8, 64>}, {transform_indices = @transform_5, window_bounds = array<i64: 1, 8, 64>}, {transform_indices = @transform_6, window_bounds = array<i64: 1, 8, 64>}]} {
    %c0 = arith.constant 0 : index
    %c0_0 = arith.constant 0 : index
    %c0_1 = arith.constant 0 : index
    %0 = vector.load %arg2[%c0, %c0_0, %c0_1] : memref<1x8x64xf32, #tpu.memory_space<vmem>>, vector<1x8x64xf32>
    %1 = vector.shape_cast %0 : vector<1x8x64xf32> to vector<8x64xf32>
    %c0_2 = arith.constant 0 : index
    %c0_3 = arith.constant 0 : index
    %2 = vector.load %arg3[%c0_2, %c0_3] : memref<1x64xf32, #tpu.memory_space<vmem>>, vector<1x64xf32>
    %c0_4 = arith.constant 0 : index
    %c0_5 = arith.constant 0 : index
    %3 = vector.load %arg4[%c0_4, %c0_5] : memref<1x64xf32, #tpu.memory_space<vmem>>, vector<1x64xf32>
    %cst = arith.constant dense<0.000000e+00> : vector<8xf32>
    %4 = vector.multi_reduction <add>, %1, %cst [1] : vector<8x64xf32> to vector<8xf32>
    %5 = vector.shape_cast %4 : vector<8xf32> to vector<8x1xf32>
    %cst_6 = arith.constant 6.400000e+01 : f32
    %6 = vector.broadcast %cst_6 : f32 to vector<8x1xf32>
    %7 = arith.divf %5, %6 : vector<8x1xf32>
    %8 = vector.broadcast %7 : vector<8x1xf32> to vector<8x64xf32>
    %9 = arith.subf %1, %8 : vector<8x64xf32>
    %10 = arith.mulf %9, %9 : vector<8x64xf32>
    %cst_7 = arith.constant dense<0.000000e+00> : vector<8xf32>
    %11 = vector.multi_reduction <add>, %10, %cst_7 [1] : vector<8x64xf32> to vector<8xf32>
    %12 = vector.shape_cast %11 : vector<8xf32> to vector<8x1xf32>
    %cst_8 = arith.constant 6.400000e+01 : f32
    %13 = vector.broadcast %cst_8 : f32 to vector<8x1xf32>
    %14 = arith.divf %12, %13 : vector<8x1xf32>
    %15 = vector.broadcast %7 : vector<8x1xf32> to vector<8x64xf32>
    %16 = arith.subf %1, %15 : vector<8x64xf32>
    %cst_9 = arith.constant 9.99999974E-6 : f32
    %17 = vector.broadcast %cst_9 : f32 to vector<8x1xf32>
    %18 = arith.addf %14, %17 : vector<8x1xf32>
    %19 = math.rsqrt %18 : vector<8x1xf32>
    %20 = vector.broadcast %19 : vector<8x1xf32> to vector<8x64xf32>
    %21 = arith.mulf %16, %20 : vector<8x64xf32>
    %22 = vector.broadcast %2 : vector<1x64xf32> to vector<8x64xf32>
    %23 = arith.mulf %21, %22 : vector<8x64xf32>
    %24 = vector.broadcast %3 : vector<1x64xf32> to vector<8x64xf32>
    %25 = arith.addf %23, %24 : vector<8x64xf32>
    %26 = arith.truncf %25 : vector<8x64xf32> to vector<8x64xbf16>
    %c0_10 = arith.constant 0 : index
    %c0_11 = arith.constant 0 : index
    %27 = vector.load %arg5[%c0_10, %c0_11] : memref<64x192xbf16, #tpu.memory_space<vmem>>, vector<64x192xbf16>
    %cst_12 = arith.constant dense<0.000000e+00> : vector<8x192xf32>
    %28 = tpu.matmul %26, %27, %cst_12 {dimension_numbers = #tpu.dot_dimension_numbers<[1], [0], [0], [1], [0, 0, 1, 1], [], []>} : vector<8x64xbf16>, vector<64x192xbf16>, vector<8x192xf32> -> vector<8x192xf32>
    %29 = vector.extract_strided_slice %28 {offsets = [0, 0], sizes = [8, 64], strides = [1, 1]} : vector<8x192xf32> to vector<8x64xf32>
    %cst_13 = arith.constant 2.500000e-01 : f32
    %30 = vector.broadcast %cst_13 : f32 to vector<8x64xf32>
    %31 = arith.mulf %29, %30 : vector<8x64xf32>
    %32 = arith.truncf %31 : vector<8x64xf32> to vector<8x64xbf16>
    %c0_14 = arith.constant 0 : index
    %c0_15 = arith.constant 0 : index
    %c0_16 = arith.constant 0 : index
    %33 = vector.load %arg6[%c0_14, %c0_15, %c0_16] : memref<1x8x64xbf16, #tpu.memory_space<vmem>>, vector<1x8x64xbf16>
    %34 = vector.shape_cast %33 : vector<1x8x64xbf16> to vector<8x64xbf16>
    %35 = vector.shape_cast %32 : vector<8x64xbf16> to vector<1x8x64xbf16>
    tpu.vector_store %arg6[%c0_14, %c0_15, %c0_16], %35 {strides = array<i32>} : memref<1x8x64xbf16, #tpu.memory_space<vmem>>, vector<1x8x64xbf16>,
    %36 = vector.extract_strided_slice %28 {offsets = [0, 64], sizes = [8, 64], strides = [1, 1]} : vector<8x192xf32> to vector<8x64xf32>
    %37 = arith.truncf %36 : vector<8x64xf32> to vector<8x64xbf16>
    %c0_17 = arith.constant 0 : index
    %c0_18 = arith.constant 0 : index
    %c0_19 = arith.constant 0 : index
    %38 = vector.load %arg7[%c0_17, %c0_18, %c0_19] : memref<1x8x64xbf16, #tpu.memory_space<vmem>>, vector<1x8x64xbf16>
    %39 = vector.shape_cast %38 : vector<1x8x64xbf16> to vector<8x64xbf16>
    %40 = vector.shape_cast %37 : vector<8x64xbf16> to vector<1x8x64xbf16>
    tpu.vector_store %arg7[%c0_17, %c0_18, %c0_19], %40 {strides = array<i32>} : memref<1x8x64xbf16, #tpu.memory_space<vmem>>, vector<1x8x64xbf16>,
    %41 = vector.extract_strided_slice %28 {offsets = [0, 128], sizes = [8, 64], strides = [1, 1]} : vector<8x192xf32> to vector<8x64xf32>
    %42 = arith.truncf %41 : vector<8x64xf32> to vector<8x64xbf16>
    %c0_20 = arith.constant 0 : index
    %c0_21 = arith.constant 0 : index
    %c0_22 = arith.constant 0 : index
    %43 = vector.load %arg8[%c0_20, %c0_21, %c0_22] : memref<1x8x64xbf16, #tpu.memory_space<vmem>>, vector<1x8x64xbf16>
    %44 = vector.shape_cast %43 : vector<1x8x64xbf16> to vector<8x64xbf16>
    %45 = vector.shape_cast %42 : vector<8x64xbf16> to vector<1x8x64xbf16>
    tpu.vector_store %arg8[%c0_20, %c0_21, %c0_22], %45 {strides = array<i32>} : memref<1x8x64xbf16, #tpu.memory_space<vmem>>, vector<1x8x64xbf16>,
    return
  }
  func.func @transform_0(%arg0: i32, %arg1: i32) -> (i32, i32, i32) {
    %c0_i32 = arith.constant 0 : i32
    %c0_i32_0 = arith.constant 0 : i32
    return %arg0, %arg1, %c0_i32 : i32, i32, i32
  }
  func.func @transform_1(%arg0: i32, %arg1: i32) -> (i32, i32) {
    %c0_i32 = arith.constant 0 : i32
    %c0_i32_0 = arith.constant 0 : i32
    %c0_i32_1 = arith.constant 0 : i32
    return %c0_i32, %c0_i32_0 : i32, i32
  }
  func.func @transform_2(%arg0: i32, %arg1: i32) -> (i32, i32) {
    %c0_i32 = arith.constant 0 : i32
    %c0_i32_0 = arith.constant 0 : i32
    %c0_i32_1 = arith.constant 0 : i32
    return %c0_i32, %c0_i32_0 : i32, i32
  }
  func.func @transform_3(%arg0: i32, %arg1: i32) -> (i32, i32) {
    %c0_i32 = arith.constant 0 : i32
    %c0_i32_0 = arith.constant 0 : i32
    %c0_i32_1 = arith.constant 0 : i32
    return %c0_i32, %c0_i32_0 : i32, i32
  }
  func.func @transform_4(%arg0: i32, %arg1: i32) -> (i32, i32, i32) {
    %c0_i32 = arith.constant 0 : i32
    %c0_i32_0 = arith.constant 0 : i32
    return %arg0, %arg1, %c0_i32 : i32, i32, i32
  }
  func.func @transform_5(%arg0: i32, %arg1: i32) -> (i32, i32, i32) {
    %c0_i32 = arith.constant 0 : i32
    %c0_i32_0 = arith.constant 0 : i32
    return %arg0, %arg1, %c0_i32 : i32, i32, i32
  }
  func.func @transform_6(%arg0: i32, %arg1: i32) -> (i32, i32, i32) {
    %c0_i32 = arith.constant 0 : i32
    %c0_i32_0 = arith.constant 0 : i32
    return %arg0, %arg1, %c0_i32 : i32, i32, i32
  }
}

</mosaic_0001>

<llo_original>
// kernel: tpu_custom_call.1
$region0: #{tpu_custom_call.1}
  #allocation0 [shape = 'u32[]', space=smem, size = 0x4, offset = 0x4, fixed_abs, tag = 'smem constant byte address 0x4 - core index']
  #allocation1 [shape = 'u32[72,128]{1,0:T(1,128)}', space=vmem, size = 0x9000, scoped, tag = 'internal scratch']
  %s0 = inlined_call_operand.hbm [shape: f32[2,16,64], index: 0, kind: input, shape index: {}]
  %s1 = inlined_call_operand.hbm [shape: f32[1,64], index: 1, kind: input, shape index: {}]
  %s2 = inlined_call_operand.vmem [shape: f32[1,64], index: 2, kind: input, shape index: {}]
  %s3 = inlined_call_operand.hbm [shape: bf16[64,192], index: 3, kind: input, shape index: {}]
  %s4 = inlined_call_operand.hbm [shape: bf16[2,16,64], index: 4, kind: output, shape index: {0}]
  %s5 = inlined_call_operand.hbm [shape: bf16[2,16,64], index: 5, kind: output, shape index: {1}]
  %s6 = inlined_call_operand.hbm [shape: bf16[2,16,64], index: 6, kind: output, shape index: {2}]
  %7 = xla_tuple %s4, %s5, %s6
  %s8 = sld [smem:[#allocation0]]
  $region77: #{tpu_custom_call.1} parent=0
    _
  %s10 = ssub.s32 1, %s8
  %s11 = scalar_select 0, %s10, %s8
  $region1: #{tpu_custom_call.1} parent=0
    #allocation2 [shape = 'u8[8192]{0}', space=vmem, size = 0x2000, scoped, tag = 'input window, operand 0']
    #allocation3 [shape = 's32[2]{0}', space=sflag, size = 0x8, scoped, tag = 'scoped memory for tpu_custom_call.1']
    #allocation4 [shape = 's32[2]{0}', space=sflag, size = 0x8, scoped, tag = 'scoped memory for tpu_custom_call.1']
    #allocation5 [shape = 'u8[512]{0}', space=vmem, size = 0x400, scoped, tag = 'input window, operand 1, single buffered']
    #allocation6 [shape = 's32[1]{0}', space=sflag, size = 0x4, scoped, tag = 'scoped memory for tpu_custom_call.1']
    #allocation7 [shape = 'u8[32768]{0}', space=vmem, size = 0x8000, scoped, tag = 'input window, operand 3, single buffered']
    #allocation8 [shape = 'u8[4096]{0}', space=vmem, size = 0x1000, scoped, tag = 'output window, operand 0']
    #allocation9 [shape = 'u8[4096]{0}', space=vmem, size = 0x1000, scoped, tag = 'output window, operand 1']
    #allocation10 [shape = 's32[2]{0}', space=sflag, size = 0x8, scoped, tag = 'scoped memory for tpu_custom_call.1']
    #allocation11 [shape = 'u8[4096]{0}', space=vmem, size = 0x1000, scoped, tag = 'output window, operand 2']
    %12 = vsyncpa [#allocation3], 0
    %s13 = scalar_lea.sflag [#allocation3], 1
    %14 = vsyncpa %s13, 0
    %15 = vsyncpa [#allocation6], 0
    %16 = vsyncpa [#allocation4], 0
    %s17 = scalar_lea.sflag [#allocation4], 1
    %18 = vsyncpa %s17, 0
    %19 = vsyncpa [#allocation10], 0
    %s20 = scalar_lea.sflag [#allocation10], 1
    %21 = vsyncpa %s20, 0
    loop: start=0, step=1, limit=6
    $region2: #{tpu_custom_call.1} parent=1 // loop_pre_header
      _
    $region3: #{tpu_custom_call.1} parent=1 // loop_header
      %s23 = sphi 0, %s27
      %p24 = scmp.ge.s32.totalorder %s23, 6
      %s30 = sphi 0, %s42
      %s31 = sphi 0, %s38
      %s32 = sphi 0, %s30
      %s33 = sphi 0, %s31
      %s34 = sphi 0, %s32
      %s35 = sphi 0, %s33
      %s47 = sphi 0, %s49
      %s50 = sphi 0, %s47
      %s51 = sphi 0, %s50
      %s67 = sphi 0, %s51
      %s71 = sphi 0, %s71
      %s73 = sphi 0, %s71
      %s74 = sphi 0, %s73
      %s88 = sphi 0, %s74
      %s92 = sphi 0, %s92
      %s94 = sphi 0, %s92
      %s95 = sphi 0, %s94
      %s109 = sphi 0, %s95
      %s113 = sphi 0, %s113
      %s115 = sphi 0, %s113
      %s116 = sphi 0, %s115
      %s130 = sphi 0, %s116
      %s138 = sphi 0, %s140
      %s141 = sphi 0, %s138
      %s142 = sphi 0, %s141
      %s158 = sphi 0, %s142
      %s166 = sphi 0, %s168
      %s169 = sphi 0, %s166
      %s170 = sphi 0, %s169
      %s186 = sphi 0, %s170
      %s194 = sphi 0, %s196
      %s197 = sphi 0, %s194
      %s198 = sphi 0, %s197
      %s214 = sphi 0, %s198
    $region4: #{tpu_custom_call.1} parent=1 // loop_header_branch
      %26 = sbr.rel (%p24) target = $region8
    $region5: #{tpu_custom_call.1} parent=1 // loop_body
      %s28 = ssub.s32 %s23, 1
      %s29 = ssub.s32 %s23, 2
      %s36 = sadd.s32 1, %s31
      %p37 = scmp.ge.s32.totalorder %s36, 2
      %s38 = scalar_select %p37, 0, %s36
      %s39 = sadd.s32 1, %s30
      %s40 = scalar_select %p37, %s39, %s30
      %p41 = scmp.ge.s32.totalorder %s40, 2
      %s42 = scalar_select %p41, 0, %s40
      %s43 = ssub.s32 %s30, %s42
      %s44 = ssub.s32 %s31, %s38
      %s45 = sor.u32 %s43, %s44
      %p46 = scmp.eq.s32.totalorder %s45, 0
      %s48 = sadd.s32 %s47, 1
      %s49 = scalar_select %p46, %s47, %s48
      %p52 = pneg %p46
      %p53 = scmp.eq.s32.totalorder %s23, 3
      %p54 = por %p52, %p53
      %p55 = scmp.ne.s32.totalorder %s47, %s50
      %p56 = scmp.eq.s32.totalorder %s23, 0
      %p57 = por %p55, %p56
      %p58 = scmp.ne.s32.totalorder %s47, %s50
      %p59 = scmp.eq.s32.totalorder %s28, 3
      %p60 = por %p58, %p59
      %p61 = scmp.ne.s32.totalorder %s50, %s51
      %p62 = scmp.eq.s32.totalorder %s28, 0
      %p63 = por %p61, %p62
      %p64 = scmp.ne.s32.totalorder %s50, %s51
      %p65 = scmp.eq.s32.totalorder %s29, 3
      %p66 = por %p64, %p65
      %p68 = scmp.ne.s32.totalorder %s51, %s67
      %p69 = scmp.eq.s32.totalorder %s29, 0
      %p70 = por %p68, %p69
      %s72 = sadd.s32 %s71, 1
      %p75 = scmp.eq.s32.totalorder %s23, 3
      %p76 = scmp.ne.s32.totalorder %s71, %s73
      %p77 = scmp.eq.s32.totalorder %s23, 0
      %p78 = por %p76, %p77
      %p79 = scmp.ne.s32.totalorder %s71, %s73
      %p80 = scmp.eq.s32.totalorder %s28, 3
      %p81 = por %p79, %p80
      %p82 = scmp.ne.s32.totalorder %s73, %s74
      %p83 = scmp.eq.s32.totalorder %s28, 0
      %p84 = por %p82, %p83
      %p85 = scmp.ne.s32.totalorder %s73, %s74
      %p86 = scmp.eq.s32.totalorder %s29, 3
      %p87 = por %p85, %p86
      %p89 = scmp.ne.s32.totalorder %s74, %s88
      %p90 = scmp.eq.s32.totalorder %s29, 0
      %p91 = por %p89, %p90
      %s93 = sadd.s32 %s92, 1
      %p96 = scmp.eq.s32.totalorder %s23, 3
      %p97 = scmp.ne.s32.totalorder %s92, %s94
      %p98 = scmp.eq.s32.totalorder %s23, 0
      %p99 = por %p97, %p98
      %p100 = scmp.ne.s32.totalorder %s92, %s94
      %p101 = scmp.eq.s32.totalorder %s28, 3
      %p102 = por %p100, %p101
      %p103 = scmp.ne.s32.totalorder %s94, %s95
      %p104 = scmp.eq.s32.totalorder %s28, 0
      %p105 = por %p103, %p104
      %p106 = scmp.ne.s32.totalorder %s94, %s95
      %p107 = scmp.eq.s32.totalorder %s29, 3
      %p108 = por %p106, %p107
      %p110 = scmp.ne.s32.totalorder %s95, %s109
      %p111 = scmp.eq.s32.totalorder %s29, 0
      %p112 = por %p110, %p111
      %s114 = sadd.s32 %s113, 1
      %p117 = scmp.eq.s32.totalorder %s23, 3
      %p118 = scmp.ne.s32.totalorder %s113, %s115
      %p119 = scmp.eq.s32.totalorder %s23, 0
      %p120 = por %p118, %p119
      %p121 = scmp.ne.s32.totalorder %s113, %s115
      %p122 = scmp.eq.s32.totalorder %s28, 3
      %p123 = por %p121, %p122
      %p124 = scmp.ne.s32.totalorder %s115, %s116
      %p125 = scmp.eq.s32.totalorder %s28, 0
      %p126 = por %p124, %p125
      %p127 = scmp.ne.s32.totalorder %s115, %s116
      %p128 = scmp.eq.s32.totalorder %s29, 3
      %p129 = por %p127, %p128
      %p131 = scmp.ne.s32.totalorder %s116, %s130
      %p132 = scmp.eq.s32.totalorder %s29, 0
      %p133 = por %p131, %p132
      %s134 = ssub.s32 %s30, %s42
      %s135 = ssub.s32 %s31, %s38
      %s136 = sor.u32 %s134, %s135
      %p137 = scmp.eq.s32.totalorder %s136, 0
      %s139 = sadd.s32 %s138, 1
      %s140 = scalar_select %p137, %s138, %s139
      %p143 = pneg %p137
      %p144 = scmp.eq.s32.totalorder %s23, 3
      %p145 = por %p143, %p144
      %p146 = scmp.ne.s32.totalorder %s138, %s141
      %p147 = scmp.eq.s32.totalorder %s23, 0
      %p148 = por %p146, %p147
      %p149 = scmp.ne.s32.totalorder %s138, %s141
      %p150 = scmp.eq.s32.totalorder %s28, 3
      %p151 = por %p149, %p150
      %p152 = scmp.ne.s32.totalorder %s141, %s142
      %p153 = scmp.eq.s32.totalorder %s28, 0
      %p154 = por %p152, %p153
      %p155 = scmp.ne.s32.totalorder %s141, %s142
      %p156 = scmp.eq.s32.totalorder %s29, 3
      %p157 = por %p155, %p156
      %p159 = scmp.ne.s32.totalorder %s142, %s158
      %p160 = scmp.eq.s32.totalorder %s29, 0
      %p161 = por %p159, %p160
      %s162 = ssub.s32 %s30, %s42
      %s163 = ssub.s32 %s31, %s38
      %s164 = sor.u32 %s162, %s163
      %p165 = scmp.eq.s32.totalorder %s164, 0
      %s167 = sadd.s32 %s166, 1
      %s168 = scalar_select %p165, %s166, %s167
      %p171 = pneg %p165
      %p172 = scmp.eq.s32.totalorder %s23, 3
      %p173 = por %p171, %p172
      %p174 = scmp.ne.s32.totalorder %s166, %s169
      %p175 = scmp.eq.s32.totalorder %s23, 0
      %p176 = por %p174, %p175
      %p177 = scmp.ne.s32.totalorder %s166, %s169
      %p178 = scmp.eq.s32.totalorder %s28, 3
      %p179 = por %p177, %p178
      %p180 = scmp.ne.s32.totalorder %s169, %s170
      %p181 = scmp.eq.s32.totalorder %s28, 0
      %p182 = por %p180, %p181
      %p183 = scmp.ne.s32.totalorder %s169, %s170
      %p184 = scmp.eq.s32.totalorder %s29, 3
      %p185 = por %p183, %p184
      %p187 = scmp.ne.s32.totalorder %s170, %s186
      %p188 = scmp.eq.s32.totalorder %s29, 0
      %p189 = por %p187, %p188
      %s190 = ssub.s32 %s30, %s42
      %s191 = ssub.s32 %s31, %s38
      %s192 = sor.u32 %s190, %s191
      %p193 = scmp.eq.s32.totalorder %s192, 0
      %s195 = sadd.s32 %s194, 1
      %s196 = scalar_select %p193, %s194, %s195
      %p199 = pneg %p193
      %p200 = scmp.eq.s32.totalorder %s23, 3
      %p201 = por %p199, %p200
      %p202 = scmp.ne.s32.totalorder %s194, %s197
      %p203 = scmp.eq.s32.totalorder %s23, 0
      %p204 = por %p202, %p203
      %p205 = scmp.ne.s32.totalorder %s194, %s197
      %p206 = scmp.eq.s32.totalorder %s28, 3
      %p207 = por %p205, %p206
      %p208 = scmp.ne.s32.totalorder %s197, %s198
      %p209 = scmp.eq.s32.totalorder %s28, 0
      %p210 = por %p208, %p209
      %p211 = scmp.ne.s32.totalorder %s197, %s198
      %p212 = scmp.eq.s32.totalorder %s29, 3
      %p213 = por %p211, %p212
      %p215 = scmp.ne.s32.totalorder %s198, %s214
      %p216 = scmp.eq.s32.totalorder %s29, 0
      %p217 = por %p215, %p216
      %p218 = scmp.le.s32.totalorder 1, %s23
      %p219 = scmp.lt.s32.totalorder %s23, 5
      %p220 = pnand %p218, %p219
      %p221 = pneg %p220
      // Predicated region
      $region9: #{tpu_custom_call.1} parent=5 // pred_check
        _
      $region10: #{tpu_custom_call.1} parent=5 // pred_check_branch
        %223 = sbr.rel (%p220) target = $region12
      $region11: #{tpu_custom_call.1} parent=5 // pred_region
        %s224 = ssub.s32 %s23, 1
        // Predicated region
        $region13: #{tpu_custom_call.1} parent=11 // pred_check
          %p225 = pneg %p84
        $region14: #{tpu_custom_call.1} parent=11 // pred_check_branch
          %227 = sbr.rel (%p225) target = $region16
        $region15: #{tpu_custom_call.1} parent=11 // pred_region
          %229 = vsyncadd [#allocation6], 0
          %s231 = sshll.u32 %s1, 4
          %s232 = int_to_ptr.hbm [resolvable:$true] %s231
          %s233 = sshll.u32 [#allocation5], 4
          %s234 = int_to_ptr.vmem [resolvable:$true] %s233
          %236 = dma.hbm_to_vmem [thread:$0]  %s232, 16, %s234, [#allocation6]
        $region16: #{tpu_custom_call.1} parent=11 // pred_fallthru
          _
        // Predicated region
        $region17: #{tpu_custom_call.1} parent=11 // pred_check
          %p237 = pneg %p105
        $region18: #{tpu_custom_call.1} parent=11 // pred_check_branch
          %239 = sbr.rel (%p237) target = $region20
        $region19: #{tpu_custom_call.1} parent=11 // pred_region
          _
        $region20: #{tpu_custom_call.1} parent=11 // pred_fallthru
          _
        // Predicated region
        $region21: #{tpu_custom_call.1} parent=11 // pred_check
          %p240 = pneg %p126
        $region22: #{tpu_custom_call.1} parent=11 // pred_check_branch
          %242 = sbr.rel (%p240) target = $region24
        $region23: #{tpu_custom_call.1} parent=11 // pred_region
          %244 = vsyncadd [#allocation6], 0
          %s245 = sshll.u32 %s3, 4
          %s246 = int_to_ptr.hbm [resolvable:$true] %s245
          %s247 = sshll.u32 [#allocation7], 4
          %s248 = int_to_ptr.vmem [resolvable:$true] %s247
          %253 = dma.hbm_to_vmem [thread:$0]  %s246, 1024, %s248, [#allocation6], 128, 128, 8
        $region24: #{tpu_custom_call.1} parent=11 // pred_fallthru
          _
      $region12: #{tpu_custom_call.1} parent=5 // pred_fallthru
        _
      %p254 = scmp.lt.s32.totalorder %s23, 4
      // Predicated region
      $region25: #{tpu_custom_call.1} parent=5 // pred_check
        %p255 = pneg %p254
      $region26: #{tpu_custom_call.1} parent=5 // pred_check_branch
        %257 = sbr.rel (%p255) target = $region28
      $region27: #{tpu_custom_call.1} parent=5 // pred_region
        // Predicated region
        $region29: #{tpu_custom_call.1} parent=27 // pred_check
          %p258 = pneg %p57
        $region30: #{tpu_custom_call.1} parent=27 // pred_check_branch
          %260 = sbr.rel (%p258) target = $region32
        $region31: #{tpu_custom_call.1} parent=27 // pred_region
          %s261 = sand.u32 %s47, 1
          %s262 = scalar_lea.sflag [#allocation3], %s261
          %s263 = sand.u32 %s47, 1
          %s264 = smul.addr %s263, 8
          %s265 = scalar_lea.vmem [#allocation2], %s264
          %267 = vsyncadd %s262, 0
          %s268 = smul.addr %s30, 2
          %s269 = sadd.s32 %s31, %s268
          %s270 = smul.addr %s269, 8
          %s271 = scalar_lea.hbm %s0, %s270
          %s273 = sshll.u32 %s271, 4
          %s274 = int_to_ptr.hbm [resolvable:$true] %s273
          %s275 = sshll.u32 %s265, 4
          %s276 = int_to_ptr.vmem [resolvable:$true] %s275
          %278 = dma.hbm_to_vmem [thread:$0]  %s274, 128, %s276, %s262
        $region32: #{tpu_custom_call.1} parent=27 // pred_fallthru
          _
      $region28: #{tpu_custom_call.1} parent=5 // pred_fallthru
        _
      %p279 = scmp.le.s32.totalorder 1, %s23
      %p280 = scmp.lt.s32.totalorder %s23, 5
      %p281 = pnand %p279, %p280
      %p282 = pneg %p281
      // Predicated region
      $region33: #{tpu_custom_call.1} parent=5 // pred_check
        _
      $region34: #{tpu_custom_call.1} parent=5 // pred_check_branch
        %284 = sbr.rel (%p281) target = $region36
      $region35: #{tpu_custom_call.1} parent=5 // pred_region
        %s285 = ssub.s32 %s23, 1
        %s286 = sand.u32 %s50, 1
        %s287 = scalar_lea.sflag [#allocation3], %s286
        %s288 = sand.u32 %s50, 1
        %s289 = smul.addr %s288, 8
        %s290 = scalar_lea.vmem [#allocation2], %s289
        // Predicated region
        $region37: #{tpu_custom_call.1} parent=35 // pred_check
          %p291 = pneg %p63
        $region38: #{tpu_custom_call.1} parent=35 // pred_check_branch
          %293 = sbr.rel (%p291) target = $region40
        $region39: #{tpu_custom_call.1} parent=35 // pred_region
          %295 = dma.done %s287, 128
        $region40: #{tpu_custom_call.1} parent=35 // pred_fallthru
          _
        // Predicated region
        $region41: #{tpu_custom_call.1} parent=35 // pred_check
          %p296 = pneg %p84
        $region42: #{tpu_custom_call.1} parent=35 // pred_check_branch
          %298 = sbr.rel (%p296) target = $region44
        $region43: #{tpu_custom_call.1} parent=35 // pred_region
          %300 = dma.done [#allocation6], 16
        $region44: #{tpu_custom_call.1} parent=35 // pred_fallthru
          _
        // Predicated region
        $region45: #{tpu_custom_call.1} parent=35 // pred_check
          %p301 = pneg %p126
        $region46: #{tpu_custom_call.1} parent=35 // pred_check_branch
          %303 = sbr.rel (%p301) target = $region48
        $region47: #{tpu_custom_call.1} parent=35 // pred_region
          %305 = dma.done [#allocation6], 1024
        $region48: #{tpu_custom_call.1} parent=35 // pred_fallthru
          _
        %s306 = sand.u32 %s50, 1
        %s307 = scalar_lea.sflag [#allocation3], %s306
        %s308 = sand.u32 %s50, 1
        %s309 = smul.addr %s308, 8
        %s310 = scalar_lea.vmem [#allocation2], %s309
        %p311 = pneg %p63
        %p312 = pneg %p60
        %p313 = pneg %p84
        %p314 = pneg %p81
        %p315 = pneg %p105
        %p316 = pneg %p102
        %p317 = pneg %p126
        %p318 = pneg %p123
        %p319 = pneg %p154
        %p320 = pneg %p151
        %s321 = sand.u32 %s141, 1
        %s322 = scalar_lea.sflag [#allocation4], %s321
        %s323 = sand.u32 %s141, 1
        %s324 = smul.addr %s323, 4
        %s325 = scalar_lea.vmem [#allocation8], %s324
        %p326 = pneg %p182
        %p327 = pneg %p179
        %s328 = sand.u32 %s28, 1
        %s329 = scalar_lea.sflag [#allocation10], %s328
        %s330 = sand.u32 %s169, 1
        %s331 = smul.addr %s330, 4
        %s332 = scalar_lea.vmem [#allocation9], %s331
        %p333 = pneg %p210
        %p334 = pneg %p207
        %s335 = sand.u32 %s28, 1
        %s336 = scalar_lea.sflag [#allocation10], %s335
        %s337 = sand.u32 %s197, 1
        %s338 = smul.addr %s337, 4
        %s339 = scalar_lea.vmem [#allocation11], %s338
        %v341 = vld [vmem:[%s290] sm:$0xff]
        %v342 = vld [vmem:[#allocation5] sm:$0x1]
        %v343 = vld [vmem:[%s2] sm:$0x1]
        %vm344 = vcmask 523264
        %v345 = vsel %vm344, %v341, 0.0
        %346 = vadd.xlane.f32.xlu0 %v345
        %v347 = vpop.xlane.xlu0 %346
        %v348 = vrcp.pop 64.0
        %v349 = vmul.f32 64.0, %v348
        %v350 = vsub.f32 1.0, %v349
        %v351 = vmul.f32 %v348, %v350
        %v352 = vadd.f32 %v348, %v351
        %vm353 = vweird.f32 %v348
        %v354 = vsel %vm353, %v348, %v352
        %v355 = vmul.f32 %v347, %v354
        %v356 = vsub.f32 %v341, %v355
        %v357 = vmul.f32 %v356, %v356
        %v358 = vsel %vm344, %v357, 0.0
        %359 = vadd.xlane.f32.xlu0 %v358
        %v360 = vpop.xlane.xlu0 %359
        %v361 = vmul.f32 %v360, %v354
        %v362 = vadd.f32 %v361, 1e-05
        %v363 = vrsqrt.pop %v362
        %v364 = vmul.f32 %v363, %v362
        %v365 = vmul.f32 %v364, %v363
        %v366 = vmul.f32 0.5, %v365
        %v367 = vsub.f32 1.5, %v366
        %v368 = vmul.f32 %v363, %v367
        %vm369 = vweird.f32 %v362
        %vm370 = vweird.f32 %v363
        %vm371 = vmor %vm369, %vm370
        %v372 = vsel %vm371, %v363, %v368
        %v373 = vmul.f32 %v356, %v372
        %v375 = vperm.slane %v342, 0
        %v377 = vmul.f32 %v373, %v375
        %v379 = vperm.slane %v343, 0
        %v381 = vadd.f32 %v377, %v379
        %v382 = vpack.c.bf16 %v381, %v381
        %v383 = vld [vmem:[#allocation7] sm:$0xff]
        %v384 = vld [vmem:[#allocation7 + $0x8] sm:$0xff]
        %v385 = vld [vmem:[#allocation7 + $0x10] sm:$0xff]
        %v386 = vld [vmem:[#allocation7 + $0x18] sm:$0xff]
        %v387 = vld [vmem:[#allocation7 + $0x20] sm:$0xff]
        %v388 = vld [vmem:[#allocation7 + $0x28] sm:$0xff]
        %v389 = vld [vmem:[#allocation7 + $0x30] sm:$0xff]
        %v390 = vld [vmem:[#allocation7 + $0x38] sm:$0xff]
        %v399 = vunpack.c.l.b16 %v383
        %v400 = vunpack.c.h.b16 %v383
        %v401 = vunpack.c.l.b16 %v384
        %v402 = vunpack.c.h.b16 %v384
        %v403 = vunpack.c.l.b16 %v385
        %v404 = vunpack.c.h.b16 %v385
        %v405 = vunpack.c.l.b16 %v386
        %v406 = vunpack.c.h.b16 %v386
        %v407 = vunpack.c.l.b16 %v387
        %v408 = vunpack.c.h.b16 %v387
        %v409 = vunpack.c.l.b16 %v388
        %v410 = vunpack.c.h.b16 %v388
        %v411 = vunpack.c.l.b16 %v389
        %v412 = vunpack.c.h.b16 %v389
        %v413 = vunpack.c.l.b16 %v390
        %v414 = vunpack.c.h.b16 %v390
        %v415 = vpack.c.b16 %v401, %v399
        %v416 = vpack.c.b16 %v402, %v400
        %v417 = vpack.c.b16 %v405, %v403
        %v418 = vpack.c.b16 %v406, %v404
        %v419 = vpack.c.b16 %v409, %v407
        %v420 = vpack.c.b16 %v410, %v408
        %v421 = vpack.c.b16 %v413, %v411
        %v422 = vpack.c.b16 %v414, %v412
        %v432 = vsel %vm344, %v382, 0
        %434 = vmatpush.bf16.msra.mxu0 0
        %435 = vmatpush.bf16.msra.mxu0 0
        %436 = vmatpush.bf16.msra.mxu0 0
        %437 = vmatpush.bf16.msra.mxu0 0
        %438 = vmatpush.bf16.msra.mxu0 %v421
        %439 = vmatpush.bf16.msra.mxu0 %v419
        %440 = vmatpush.bf16.msra.mxu0 %v417
        %441 = vmatpush.bf16.msra.mxu0 %v415
        %442 = vmatmul.bf16.gmra.mxu0 %v432
        %v443 = vpop.f32.mrf.mxu0
        %v444 = vadd.f32 0.0, %v443
        %v445 = vpop.f32.mrf.mxu0
        %446 = vdwg.mxu0
        %447 = vmatpush.bf16.msra.mxu0 0
        %448 = vmatpush.bf16.msra.mxu0 0
        %449 = vmatpush.bf16.msra.mxu0 0
        %450 = vmatpush.bf16.msra.mxu0 0
        %451 = vmatpush.bf16.msra.mxu0 %v422
        %452 = vmatpush.bf16.msra.mxu0 %v420
        %453 = vmatpush.bf16.msra.mxu0 %v418
        %454 = vmatpush.bf16.msra.mxu0 %v416
        %455 = vmatmul.bf16.gmra.mxu0 %v432
        %v456 = vpop.f32.mrf.mxu0
        %v457 = vadd.f32 0.0, %v456
        %v458 = vpop.f32.mrf.mxu0
        %459 = vdwg.mxu0
        %v460 = vmul.f32 %v444, 0.25
        %v461 = vpack.c.bf16 %v460, %v460
        %vm462 = vcmask 519168
        %463 = vst.msk [vmem:[%s325] sm:$0xf] %vm462, %v461
        %v464 = vpack.c.bf16 %v444, %v444
        %466 = vrot.lane.b32.xlu0 %v464, 64
        %v467 = vpop.permute.xlu0 %466
        %469 = vst.msk [vmem:[%s332] sm:$0xf] %vm462, %v467
        %v470 = vpack.c.bf16 %v457, %v457
        %471 = vst.msk [vmem:[%s339] sm:$0xf] %vm462, %v470
        %s472 = sand.u32 %s141, 1
        %s473 = scalar_lea.sflag [#allocation4], %s472
        %s474 = sand.u32 %s141, 1
        %s475 = smul.addr %s474, 4
        %s476 = scalar_lea.vmem [#allocation8], %s475
        %s477 = sand.u32 %s28, 1
        %s478 = scalar_lea.sflag [#allocation10], %s477
        %s479 = sand.u32 %s169, 1
        %s480 = smul.addr %s479, 4
        %s481 = scalar_lea.vmem [#allocation9], %s480
        %s482 = sand.u32 %s28, 1
        %s483 = scalar_lea.sflag [#allocation10], %s482
        %s484 = sand.u32 %s197, 1
        %s485 = smul.addr %s484, 4
        %s486 = scalar_lea.vmem [#allocation11], %s485
        // Predicated region
        $region49: #{tpu_custom_call.1} parent=35 // pred_check
          %p487 = pneg %p151
        $region50: #{tpu_custom_call.1} parent=35 // pred_check_branch
          %489 = sbr.rel (%p487) target = $region52
        $region51: #{tpu_custom_call.1} parent=35 // pred_region
          %491 = vsyncadd %s473, 0
          %s492 = smul.addr %s32, 2
          %s493 = sadd.s32 %s33, %s492
          %s494 = smul.addr %s493, 4
          %s495 = scalar_lea.hbm %s4, %s494
          %s497 = sshll.u32 %s476, 4
          %s498 = int_to_ptr.vmem [resolvable:$true] %s497
          %s499 = sshll.u32 %s495, 4
          %s500 = int_to_ptr.hbm [resolvable:$true] %s499
          %502 = dma.vmem_to_hbm [thread:$0]  %s498, 64, %s500, %s473
        $region52: #{tpu_custom_call.1} parent=35 // pred_fallthru
          _
        // Predicated region
        $region53: #{tpu_custom_call.1} parent=35 // pred_check
          %p503 = pneg %p179
        $region54: #{tpu_custom_call.1} parent=35 // pred_check_branch
          %505 = sbr.rel (%p503) target = $region56
        $region55: #{tpu_custom_call.1} parent=35 // pred_region
          %507 = vsyncadd %s478, 0
          %s508 = smul.addr %s32, 2
          %s509 = sadd.s32 %s33, %s508
          %s510 = smul.addr %s509, 4
          %s511 = scalar_lea.hbm %s5, %s510
          %s513 = sshll.u32 %s481, 4
          %s514 = int_to_ptr.vmem [resolvable:$true] %s513
          %s515 = sshll.u32 %s511, 4
          %s516 = int_to_ptr.hbm [resolvable:$true] %s515
          %518 = dma.vmem_to_hbm [thread:$0]  %s514, 64, %s516, %s478
        $region56: #{tpu_custom_call.1} parent=35 // pred_fallthru
          _
        // Predicated region
        $region57: #{tpu_custom_call.1} parent=35 // pred_check
          %p519 = pneg %p207
        $region58: #{tpu_custom_call.1} parent=35 // pred_check_branch
          %521 = sbr.rel (%p519) target = $region60
        $region59: #{tpu_custom_call.1} parent=35 // pred_region
          %523 = vsyncadd %s483, 0
          %s524 = smul.addr %s32, 2
          %s525 = sadd.s32 %s33, %s524
          %s526 = smul.addr %s525, 4
          %s527 = scalar_lea.hbm %s6, %s526
          %s529 = sshll.u32 %s486, 4
          %s530 = int_to_ptr.vmem [resolvable:$true] %s529
          %s531 = sshll.u32 %s527, 4
          %s532 = int_to_ptr.hbm [resolvable:$true] %s531
          %534 = dma.vmem_to_hbm [thread:$0]  %s530, 64, %s532, %s483
        $region60: #{tpu_custom_call.1} parent=35 // pred_fallthru
          _
      $region36: #{tpu_custom_call.1} parent=5 // pred_fallthru
        _
      %p535 = scmp.le.s32.totalorder 2, %s23
      // Predicated region
      $region61: #{tpu_custom_call.1} parent=5 // pred_check
        %p536 = pneg %p535
      $region62: #{tpu_custom_call.1} parent=5 // pred_check_branch
        %538 = sbr.rel (%p536) target = $region64
      $region63: #{tpu_custom_call.1} parent=5 // pred_region
        %s539 = ssub.s32 %s23, 2
        // Predicated region
        $region65: #{tpu_custom_call.1} parent=63 // pred_check
          %p540 = pneg %p157
        $region66: #{tpu_custom_call.1} parent=63 // pred_check_branch
          %542 = sbr.rel (%p540) target = $region68
        $region67: #{tpu_custom_call.1} parent=63 // pred_region
          %s543 = sand.u32 %s142, 1
          %s544 = scalar_lea.sflag [#allocation4], %s543
          %s545 = sand.u32 %s142, 1
          %s546 = smul.addr %s545, 4
          %s547 = scalar_lea.vmem [#allocation8], %s546
          %549 = dma.done %s544, 64
        $region68: #{tpu_custom_call.1} parent=63 // pred_fallthru
          _
        // Predicated region
        $region69: #{tpu_custom_call.1} parent=63 // pred_check
          %p550 = pneg %p185
        $region70: #{tpu_custom_call.1} parent=63 // pred_check_branch
          %552 = sbr.rel (%p550) target = $region72
        $region71: #{tpu_custom_call.1} parent=63 // pred_region
          %s553 = sand.u32 %s29, 1
          %s554 = scalar_lea.sflag [#allocation10], %s553
          %s555 = sand.u32 %s170, 1
          %s556 = smul.addr %s555, 4
          %s557 = scalar_lea.vmem [#allocation9], %s556
          %559 = dma.done %s554, 64
        $region72: #{tpu_custom_call.1} parent=63 // pred_fallthru
          _
        // Predicated region
        $region73: #{tpu_custom_call.1} parent=63 // pred_check
          %p560 = pneg %p213
        $region74: #{tpu_custom_call.1} parent=63 // pred_check_branch
          %562 = sbr.rel (%p560) target = $region76
        $region75: #{tpu_custom_call.1} parent=63 // pred_region
          %s563 = sand.u32 %s29, 1
          %s564 = scalar_lea.sflag [#allocation10], %s563
          %s565 = sand.u32 %s198, 1
          %s566 = smul.addr %s565, 4
          %s567 = scalar_lea.vmem [#allocation11], %s566
          %569 = dma.done %s564, 64
        $region76: #{tpu_custom_call.1} parent=63 // pred_fallthru
          _
      $region64: #{tpu_custom_call.1} parent=5 // pred_fallthru
        _
    $region6: #{tpu_custom_call.1} parent=1 // loop_footer
      %s27 = sadd.s32 1, %s23
    $region7: #{tpu_custom_call.1} parent=1 // loop_footer_branch
      %22 = sbr.rel target = $region3
    $region8: #{tpu_custom_call.1} parent=1 // loop_exit
      _
    %570 = vsyncpa [#allocation3], 1
    %s571 = scalar_lea.sflag [#allocation3], 1
    %572 = vsyncpa %s571, 1
    %573 = vsyncpa [#allocation6], 1
    %574 = vsyncpa [#allocation4], 1
    %s575 = scalar_lea.sflag [#allocation4], 1
    %576 = vsyncpa %s575, 1
    %577 = vsyncpa [#allocation10], 1
    %s578 = scalar_lea.sflag [#allocation10], 1
    %579 = vsyncpa %s578, 1

</llo_original>
